<compile_context>
chip_gen: v5e
topology: v5e:2x2
jax: 0.10.0
libtpu: 0.0.40
codegen_flags: <defaults>
</compile_context>

<pallas_src>
import math
from functools import partial

import jax
import jax.numpy as jnp
from jax import lax
from jax.experimental import pallas as pl
from jax.experimental.pallas import tpu as pltpu

EPS = float(jnp.finfo(jnp.float32).eps)  # nn.RMSNorm default eps for float32
NEG = -1e30


def _lqa_kernel(num_heads,
                x_ref, q_ref, mask_ref,
                wq_ref, wk_ref, wv_ref, wo_ref, gin_ref,
                out_ref, w_ref,
                xn_scr, ssq_scr):
    """One grid step = (one batch block, one head)."""
    h = pl.program_id(1)
    TB, S, D = x_ref.shape
    Q = q_ref.shape[1]
    hd = wq_ref.shape[-1]
    H = num_heads

    # ---- per-batch-block one-time work: in_norm (RMSNorm) + accumulator init ----
    @pl.when(h == 0)
    def _():
        x = x_ref[...].reshape(TB * S, D)                       # f32
        ms = jnp.mean(x * x, axis=-1, keepdims=True)
        xn = x * lax.rsqrt(ms + EPS) * gin_ref[...]             # (TB*S, D) f32
        xn_scr[...] = xn.astype(jnp.bfloat16)
        ssq_scr[...] = jnp.zeros_like(ssq_scr)
        out_ref[...] = jnp.zeros_like(out_ref)                  # output-resident acc
        w_ref[...] = jnp.zeros_like(w_ref)                      # output-resident acc

    xn_b = xn_scr[...]                                          # (TB*S, D) bf16
    qz = q_ref[...].reshape(TB * Q, D)                          # bf16 queries

    # ---- this head's projections (scale folded into wq) ----
    qh = jnp.dot(qz, wq_ref[0], preferred_element_type=jnp.float32)    # (TB*Q, hd)
    kh = jnp.dot(xn_b, wk_ref[0], preferred_element_type=jnp.float32)  # (TB*S, hd)
    vh = jnp.dot(xn_b, wv_ref[0], preferred_element_type=jnp.float32)  # (TB*S, hd)
    qh3 = qh.astype(jnp.bfloat16).reshape(TB, Q, hd)
    kh3 = kh.astype(jnp.bfloat16).reshape(TB, S, hd)
    vh3 = vh.astype(jnp.bfloat16).reshape(TB, S, hd)

    # ---- scores + safe softmax (select-based masking, no f32 mask temporary) ----
    s = jnp.einsum('bqd,bkd->bqk', qh3, kh3,
                   preferred_element_type=jnp.float32)                 # (TB, Q, S) f32
    msk = mask_ref[0] != 0                                             # (TB, Q, S) bool
    s = jnp.where(msk, NEG, s)
    m = jnp.max(s, axis=-1, keepdims=True)
    p = jnp.where(msk, 0.0, jnp.exp(s - m))
    denom = jnp.sum(p, axis=-1, keepdims=True)
    inv = pl.reciprocal(jnp.where(denom == 0.0, 1.0, denom), approx=True)
    wts = p * inv                                                      # (TB, Q, S) f32
    w_ref[...] += wts

    # ---- context + per-head output projection (g_out folded into wo) ----
    ctx = jnp.einsum('bqk,bkd->bqd', wts.astype(jnp.bfloat16), vh3,
                     preferred_element_type=jnp.float32)               # (TB, Q, hd)
    ctx2 = ctx.reshape(TB * Q, hd)
    ssq_scr[...] += jnp.sum(ctx2 * ctx2, axis=-1, keepdims=True)
    out_ref[...] += jnp.dot(ctx2.astype(jnp.bfloat16), wo_ref[0],
                            preferred_element_type=jnp.float32).reshape(TB, Q, D)

    # ---- finalize: out_norm (rms over the concatenated heads) + mean over heads ----
    @pl.when(h == pl.num_programs(1) - 1)
    def _():
        inv_rms = lax.rsqrt(ssq_scr[...] * (1.0 / D) + EPS)            # (TB*Q, 1)
        out_ref[...] = out_ref[...] * inv_rms.reshape(TB, Q, 1)
        w_ref[...] = w_ref[...] * (1.0 / H)


def _vmem_capacity_bytes():
    try:
        info = pltpu.get_tpu_info()
        cap = getattr(info, "vmem_capacity_bytes", None)
        if cap:
            return int(cap)
    except Exception:
        pass
    return 64 * 1024 * 1024  # conservative default (v7x per-TensorCore)


def _estimate_step_vmem_bytes(TB, S, D, Q, hd):
    """Rough per-grid-step VMEM footprint (bytes) for the kernel above."""
    # pipeline inputs (double buffered)
    x_in = TB * S * D * 4
    q_in = TB * Q * D * 2
    m_in = TB * max(Q, 32) * max(S, 128)            # int8, sublane/lane-padded tile
    w_in = 3 * D * hd * 2 + hd * D * 2 + D * 4
    # output-resident accumulators
    out_res = TB * Q * D * 4 + TB * Q * S * 4
    # scratch
    scr = TB * S * D * 2 + TB * Q * 4 * 128
    # large in-kernel temporaries (scores/probs/weights f32; k/v/ctx f32+bf16)
    tmp = 3 * TB * Q * S * 4 + 2 * TB * S * hd * 6 + TB * S * D * 4 + TB * Q * D * 4
    return 2 * (x_in + q_in + m_in + w_in) + 2 * out_res + scr + tmp


def _pick_batch_block(B, S, D, Q, hd, budget_bytes):
    divisors = [tb for tb in range(1, B + 1) if B % tb == 0]
    fits = [tb for tb in divisors
            if _estimate_step_vmem_bytes(tb, S, D, Q, hd) <= budget_bytes]
    if not fits:
        return 1
    # keep >= 4 parallel batch steps when possible (v7x: >=2 steps per TensorCore),
    # else >= 2 (single-TC v5e/v6e pipeline steady state), else the largest fitting.
    for min_steps in (4, 2, 1):
        cand = [tb for tb in fits if B // tb >= min_steps]
        if cand:
            return max(cand)
    return max(fits)


def learned_query_attention(x, queries, attn_mask, key_padding_mask,
                            wq, wk, wv, wo, g_in, g_out,
                            num_heads, batch_block=None):
    """Forward pass of LearnedQueryAttention as a single Pallas TPU kernel.

    x: (B,S,D) f32, queries: (B,Q,D) f32, attn_mask: (B*H,Q,S) bool (True == masked),
    key_padding_mask: (B,S) bool or None, wq/wk/wv/wo: nn.Linear weights (D,D)
    (y = x @ W.T), g_in/g_out: RMSNorm weights (D,).
    Returns (attn_output (B,Q,D), attn_weights mean over heads (B,Q,S))."""
    B, S, D = x.shape
    Q = queries.shape[1]
    H = num_heads
    hd = D // H

    # ---- hardware-aware tiling / VMEM limit ----
    vmem_cap = _vmem_capacity_bytes()
    vmem_limit = max(32 * 1024 * 1024, int(min(vmem_cap, 128 * 1024 * 1024) * 0.75))
    if batch_block is None:
        batch_block = _pick_batch_block(B, S, D, Q, hd, int(vmem_limit * 0.8))
    TB = batch_block
    assert B % TB == 0, "batch_block must divide the batch size"

    bf16 = jnp.bfloat16
    scale = 1.0 / math.sqrt(hd)

    def split_heads(w_t):               # (D_in, D_out) -> (H, D_in, hd)
        return w_t.reshape(D, H, hd).transpose(1, 0, 2)

    # one-time weight prep (wrapper-side, tiny): per-head split, bf16 cast,
    # score scale folded into wq, out_norm weight folded into out_proj.
    wq_h = (split_heads(wq.T) * scale).astype(bf16)      # (H, D, hd)
    wk_h = split_heads(wk.T).astype(bf16)                 # (H, D, hd)
    wv_h = split_heads(wv.T).astype(bf16)                 # (H, D, hd)
    wo_h = (g_out[:, None] * wo.T).reshape(H, hd, D).astype(bf16)   # (H, hd, D)
    gin2 = g_in.reshape(1, D).astype(jnp.float32)

    q_bf = queries.astype(bf16)

    combined = attn_mask.reshape(B, H, Q, S)
    if key_padding_mask is not None:
        combined = combined | key_padding_mask[:, None, None, :]
    # head-major int8 mask: per grid step only one head's (TB,Q,S) slab is DMA'd
    mask_i8 = jnp.transpose(combined, (1, 0, 2, 3)).astype(jnp.int8)    # (H, B, Q, S)

    kernel = partial(_lqa_kernel, H)

    # advisory cost estimate for the XLA scheduler
    flops = 2.0 * B * D * D * (2 * S + 2 * Q) + 4.0 * B * Q * S * D
    bytes_accessed = (x.size * 4 + q_bf.size * 2 + mask_i8.size +
                      (wq_h.size + wk_h.size + wv_h.size + wo_h.size) * 2 +
                      gin2.size * 4 + B * Q * D * 4 + B * Q * S * 4)
    cost = pl.CostEstimate(flops=int(flops),
                           transcendentals=int(B * H * Q * S),
                           bytes_accessed=int(bytes_accessed))

    grid_spec = pltpu.PrefetchScalarGridSpec(
        num_scalar_prefetch=0,
        grid=(B // TB, H),                                          # heads = trailing axis
        in_specs=[
            pl.BlockSpec((TB, S, D), lambda b, h: (b, 0, 0)),       # x (f32), resident over h
            pl.BlockSpec((TB, Q, D), lambda b, h: (b, 0, 0)),       # queries (bf16), resident over h
            pl.BlockSpec((1, TB, Q, S), lambda b, h: (h, b, 0, 0)), # mask (int8), one head per step
            pl.BlockSpec((1, D, hd), lambda b, h: (h, 0, 0)),       # wq per head (scaled)
            pl.BlockSpec((1, D, hd), lambda b, h: (h, 0, 0)),       # wk per head
            pl.BlockSpec((1, D, hd), lambda b, h: (h, 0, 0)),       # wv per head
            pl.BlockSpec((1, hd, D), lambda b, h: (h, 0, 0)),       # wo per head (g_out folded)
            pl.BlockSpec((1, D), lambda b, h: (0, 0)),              # in_norm weight (invariant)
        ],
        out_specs=[
            pl.BlockSpec((TB, Q, D), lambda b, h: (b, 0, 0)),       # output-resident accumulator
            pl.BlockSpec((TB, Q, S), lambda b, h: (b, 0, 0)),       # output-resident accumulator
        ],
        scratch_shapes=[
            pltpu.VMEM((TB * S, D), jnp.bfloat16),                  # RMSNorm'd x (per batch block)
            pltpu.VMEM((TB * Q, 1), jnp.float32),                   # out_norm sum-of-squares
        ],
    )

    return pl.pallas_call(
        kernel,
        out_shape=(jax.ShapeDtypeStruct((B, Q, D), jnp.float32),
                   jax.ShapeDtypeStruct((B, Q, S), jnp.float32)),
        grid_spec=grid_spec,
        compiler_params=pltpu.CompilerParams(
            dimension_semantics=("parallel", "arbitrary"),
            vmem_limit_bytes=int(vmem_limit)),
        cost_estimate=cost,
    )(x, q_bf, mask_i8, wq_h, wk_h, wv_h, wo_h, gin2)


def _reference(x, queries, combined_mask, wq, wk, wv, wo, g_in, g_out, num_heads):
    """Pure-JAX f32 reference matching the PyTorch forward."""
    B, S, D = x.shape
    Q = queries.shape[1]
    H = num_heads
    hd = D // H
    ms = jnp.mean(x * x, axis=-1, keepdims=True)
    x_norm = x / jnp.sqrt(ms + EPS) * g_in
    qp = queries @ wq.T
    kp = x_norm @ wk.T
    vp = x_norm @ wv.T
    q = qp.reshape(B, Q, H, hd).transpose(0, 2, 1, 3)
    k = kp.reshape(B, S, H, hd).transpose(0, 2, 3, 1)
    v = vp.reshape(B, S, H, hd).transpose(0, 2, 1, 3)
    scores = (q @ k) / math.sqrt(hd)
    scores = jnp.where(combined_mask, -1e30, scores)
    m = jnp.max(scores, axis=-1, keepdims=True)
    p = jnp.where(combined_mask, 0.0, jnp.exp(scores - m))
    denom = jnp.sum(p, axis=-1, keepdims=True)
    w = p / jnp.where(denom == 0, 1.0, denom)
    out = (w @ v).transpose(0, 2, 1, 3).reshape(B, Q, D)
    ms_o = jnp.mean(out * out, axis=-1, keepdims=True)
    out_n = out / jnp.sqrt(ms_o + EPS) * g_out
    return out_n @ wo.T, w.mean(axis=1)


def _xavier_uniform(key, shape):
    fan_in, fan_out = shape[1], shape[0]
    a = math.sqrt(6.0 / (fan_in + fan_out))
    return jax.random.uniform(key, shape, jnp.float32, -a, a)


if __name__ == "__main__":
    # small shapes consistent with the module
    B, S, D = 4, 16, 32
    H = 4
    L = 4          # num_queries_per_segment
    N_seg = 2
    Q = N_seg * L  # total queries

    key = jax.random.PRNGKey(0)
    ks = jax.random.split(key, 8)

    # parameters (deterministic, matching __init__ shapes / init schemes)
    wq = _xavier_uniform(ks[0], (D, D))
    wk = _xavier_uniform(ks[1], (D, D))
    wv = _xavier_uniform(ks[2], (D, D))
    wo = _xavier_uniform(ks[3], (D, D))
    query_template = 0.02 * jax.random.normal(ks[4], (L, D), jnp.float32)
    g_in = jnp.ones((D,), jnp.float32)    # nn.RMSNorm weight init
    g_out = jnp.ones((D,), jnp.float32)

    # inputs
    x = jax.random.normal(ks[5], (B, S, D), jnp.float32)
    queries = jnp.broadcast_to(jnp.tile(query_template, (N_seg, 1)), (B, Q, D))

    # segment-restricted attention mask: True = masked
    seg_of_query = jnp.arange(Q) // L
    seg_of_key = jnp.arange(S) // (S // N_seg)
    attn_mask = seg_of_query[:, None] != seg_of_key[None, :]           # (Q, S)
    attn_mask = jnp.broadcast_to(attn_mask, (B * H, Q, S))             # (B*H, Q, S)

    # key padding mask: pad out the last 3 keys of batch element 1
    key_padding_mask = jnp.zeros((B, S), dtype=bool).at[1, S - 3:].set(True)

    attn_out, attn_w = learned_query_attention(
        x, queries, attn_mask, key_padding_mask,
        wq, wk, wv, wo, g_in, g_out, H)
    jax.block_until_ready((attn_out, attn_w))

    combined_mask = attn_mask.reshape(B, H, Q, S) | key_padding_mask[:, None, None, :]
    ref_out, ref_w = _reference(
        x, queries, combined_mask, wq, wk, wv, wo, g_in, g_out, H)

    # bf16 MXU operands -> looser tolerances than a pure-f32 implementation
    assert jnp.allclose(attn_out, ref_out, atol=3e-2, rtol=3e-2), \
        f"max |diff| = {float(jnp.max(jnp.abs(attn_out - ref_out)))}"
    assert jnp.allclose(attn_w, ref_w, atol=1e-2, rtol=1e-2), \
        f"max |diff| = {float(jnp.max(jnp.abs(attn_w - ref_w)))}"
    print("KERNEL_OK")
</pallas_src>

<mosaic_0001>
module attributes {stable_mosaic.version = 11 : i64} {
  func.func @_lqa_kernel(%arg0: i32, %arg1: i32, %arg2: memref<1x16x32xf32, #tpu.memory_space<vmem>>, %arg3: memref<1x8x32xbf16, #tpu.memory_space<vmem>>, %arg4: memref<1x1x8x16xi8, #tpu.memory_space<vmem>>, %arg5: memref<1x32x8xbf16, #tpu.memory_space<vmem>>, %arg6: memref<1x32x8xbf16, #tpu.memory_space<vmem>>, %arg7: memref<1x32x8xbf16, #tpu.memory_space<vmem>>, %arg8: memref<1x8x32xbf16, #tpu.memory_space<vmem>>, %arg9: memref<1x32xf32, #tpu.memory_space<vmem>>, %arg10: memref<1x8x32xf32, #tpu.memory_space<vmem>>, %arg11: memref<1x8x16xf32, #tpu.memory_space<vmem>>, %arg12: memref<16x32xbf16, #tpu.memory_space<vmem>>, %arg13: memref<8x1xf32, #tpu.memory_space<vmem>>) attributes {dimension_semantics = [#tpu.dimension_semantics<parallel>, #tpu.dimension_semantics<arbitrary>], iteration_bounds = array<i64: 4, 4>, scalar_prefetch = 0 : i64, scratch_operands = 2 : i64, tpu.core_type = #tpu.core_type<tc>, window_params = [{transform_indices = @transform_0, window_bounds = array<i64: 1, 16, 32>}, {transform_indices = @transform_1, window_bounds = array<i64: 1, 8, 32>}, {transform_indices = @transform_2, window_bounds = array<i64: 1, 1, 8, 16>}, {transform_indices = @transform_3, window_bounds = array<i64: 1, 32, 8>}, {transform_indices = @transform_4, window_bounds = array<i64: 1, 32, 8>}, {transform_indices = @transform_5, window_bounds = array<i64: 1, 32, 8>}, {transform_indices = @transform_6, window_bounds = array<i64: 1, 8, 32>}, {pipeline_mode = #tpu.pipeline_mode<synchronous>, transform_indices = @transform_7, window_bounds = array<i64: 1, 32>}, {transform_indices = @transform_8, window_bounds = array<i64: 1, 8, 32>}, {transform_indices = @transform_9, window_bounds = array<i64: 1, 8, 16>}]} {
    %c0_i32 = arith.constant 0 : i32
    %0 = arith.cmpi eq, %arg1, %c0_i32 : i32
    %1 = arith.extui %0 : i1 to i32
    %c0_i32_0 = arith.constant 0 : i32
    %2 = arith.cmpi ne, %1, %c0_i32_0 : i32
    scf.if %2 {
      %c0_50 = arith.constant 0 : index
      %c0_51 = arith.constant 0 : index
      %c0_52 = arith.constant 0 : index
      %67 = vector.load %arg2[%c0_50, %c0_51, %c0_52] : memref<1x16x32xf32, #tpu.memory_space<vmem>>, vector<1x16x32xf32>
      %68 = vector.shape_cast %67 : vector<1x16x32xf32> to vector<16x32xf32>
      %69 = arith.mulf %68, %68 : vector<16x32xf32>
      %cst_53 = arith.constant dense<0.000000e+00> : vector<16xf32>
      %70 = vector.multi_reduction <add>, %69, %cst_53 [1] : vector<16x32xf32> to vector<16xf32>
      %71 = vector.shape_cast %70 : vector<16xf32> to vector<16x1xf32>
      %cst_54 = arith.constant 3.200000e+01 : f32
      %72 = vector.broadcast %cst_54 : f32 to vector<16x1xf32>
      %73 = arith.divf %71, %72 : vector<16x1xf32>
      %cst_55 = arith.constant 1.1920929E-7 : f32
      %74 = vector.broadcast %cst_55 : f32 to vector<16x1xf32>
      %75 = arith.addf %73, %74 : vector<16x1xf32>
      %76 = math.rsqrt %75 : vector<16x1xf32>
      %77 = vector.broadcast %76 : vector<16x1xf32> to vector<16x32xf32>
      %78 = arith.mulf %68, %77 : vector<16x32xf32>
      %c0_56 = arith.constant 0 : index
      %c0_57 = arith.constant 0 : index
      %79 = vector.load %arg9[%c0_56, %c0_57] : memref<1x32xf32, #tpu.memory_space<vmem>>, vector<1x32xf32>
      %80 = vector.broadcast %79 : vector<1x32xf32> to vector<16x32xf32>
      %81 = arith.mulf %78, %80 : vector<16x32xf32>
      %82 = arith.truncf %81 : vector<16x32xf32> to vector<16x32xbf16>
      %c0_58 = arith.constant 0 : index
      %c0_59 = arith.constant 0 : index
      %83 = vector.load %arg12[%c0_58, %c0_59] : memref<16x32xbf16, #tpu.memory_space<vmem>>, vector<16x32xbf16>
      tpu.vector_store %arg12[%c0_58, %c0_59], %82 {strides = array<i32>} : memref<16x32xbf16, #tpu.memory_space<vmem>>, vector<16x32xbf16>,
      %cst_60 = arith.constant 0.000000e+00 : f32
      %84 = vector.broadcast %cst_60 : f32 to vector<8x1xf32>
      %c0_61 = arith.constant 0 : index
      %c0_62 = arith.constant 0 : index
      %85 = vector.load %arg13[%c0_61, %c0_62] : memref<8x1xf32, #tpu.memory_space<vmem>>, vector<8x1xf32>
      tpu.vector_store %arg13[%c0_61, %c0_62], %84 {strides = array<i32>} : memref<8x1xf32, #tpu.memory_space<vmem>>, vector<8x1xf32>,
      %cst_63 = arith.constant 0.000000e+00 : f32
      %86 = vector.broadcast %cst_63 : f32 to vector<1x8x32xf32>
      %c0_64 = arith.constant 0 : index
      %c0_65 = arith.constant 0 : index
      %c0_66 = arith.constant 0 : index
      %87 = vector.load %arg10[%c0_64, %c0_65, %c0_66] : memref<1x8x32xf32, #tpu.memory_space<vmem>>, vector<1x8x32xf32>
      tpu.vector_store %arg10[%c0_64, %c0_65, %c0_66], %86 {strides = array<i32>} : memref<1x8x32xf32, #tpu.memory_space<vmem>>, vector<1x8x32xf32>,
      %cst_67 = arith.constant 0.000000e+00 : f32
      %88 = vector.broadcast %cst_67 : f32 to vector<1x8x16xf32>
      %c0_68 = arith.constant 0 : index
      %c0_69 = arith.constant 0 : index
      %c0_70 = arith.constant 0 : index
      %89 = vector.load %arg11[%c0_68, %c0_69, %c0_70] : memref<1x8x16xf32, #tpu.memory_space<vmem>>, vector<1x8x16xf32>
      tpu.vector_store %arg11[%c0_68, %c0_69, %c0_70], %88 {strides = array<i32>} : memref<1x8x16xf32, #tpu.memory_space<vmem>>, vector<1x8x16xf32>,
    } else {
    }
    %c0 = arith.constant 0 : index
    %c0_1 = arith.constant 0 : index
    %3 = vector.load %arg12[%c0, %c0_1] : memref<16x32xbf16, #tpu.memory_space<vmem>>, vector<16x32xbf16>
    %c0_2 = arith.constant 0 : index
    %c0_3 = arith.constant 0 : index
    %c0_4 = arith.constant 0 : index
    %4 = vector.load %arg3[%c0_2, %c0_3, %c0_4] : memref<1x8x32xbf16, #tpu.memory_space<vmem>>, vector<1x8x32xbf16>
    %5 = vector.shape_cast %4 : vector<1x8x32xbf16> to vector<8x32xbf16>
    %c0_5 = arith.constant 0 : index
    %c0_6 = arith.constant 0 : index
    %c0_7 = arith.constant 0 : index
    %6 = vector.load %arg5[%c0_5, %c0_6, %c0_7] : memref<1x32x8xbf16, #tpu.memory_space<vmem>>, vector<1x32x8xbf16>
    %7 = vector.shape_cast %6 : vector<1x32x8xbf16> to vector<32x8xbf16>
    %cst = arith.constant dense<0.000000e+00> : vector<8x8xf32>
    %8 = tpu.matmul %5, %7, %cst {dimension_numbers = #tpu.dot_dimension_numbers<[1], [0], [0], [1], [0, 0, 1, 1], [], []>} : vector<8x32xbf16>, vector<32x8xbf16>, vector<8x8xf32> -> vector<8x8xf32>
    %c0_8 = arith.constant 0 : index
    %c0_9 = arith.constant 0 : index
    %c0_10 = arith.constant 0 : index
    %9 = vector.load %arg6[%c0_8, %c0_9, %c0_10] : memref<1x32x8xbf16, #tpu.memory_space<vmem>>, vector<1x32x8xbf16>
    %10 = vector.shape_cast %9 : vector<1x32x8xbf16> to vector<32x8xbf16>
    %cst_11 = arith.constant dense<0.000000e+00> : vector<16x8xf32>
    %11 = tpu.matmul %3, %10, %cst_11 {dimension_numbers = #tpu.dot_dimension_numbers<[1], [0], [0], [1], [0, 0, 1, 1], [], []>} : vector<16x32xbf16>, vector<32x8xbf16>, vector<16x8xf32> -> vector<16x8xf32>
    %c0_12 = arith.constant 0 : index
    %c0_13 = arith.constant 0 : index
    %c0_14 = arith.constant 0 : index
    %12 = vector.load %arg7[%c0_12, %c0_13, %c0_14] : memref<1x32x8xbf16, #tpu.memory_space<vmem>>, vector<1x32x8xbf16>
    %13 = vector.shape_cast %12 : vector<1x32x8xbf16> to vector<32x8xbf16>
    %cst_15 = arith.constant dense<0.000000e+00> : vector<16x8xf32>
    %14 = tpu.matmul %3, %13, %cst_15 {dimension_numbers = #tpu.dot_dimension_numbers<[1], [0], [0], [1], [0, 0, 1, 1], [], []>} : vector<16x32xbf16>, vector<32x8xbf16>, vector<16x8xf32> -> vector<16x8xf32>
    %15 = arith.truncf %8 : vector<8x8xf32> to vector<8x8xbf16>
    %16 = vector.shape_cast %15 : vector<8x8xbf16> to vector<1x8x8xbf16>
    %17 = arith.truncf %11 : vector<16x8xf32> to vector<16x8xbf16>
    %18 = vector.shape_cast %17 : vector<16x8xbf16> to vector<1x16x8xbf16>
    %19 = arith.truncf %14 : vector<16x8xf32> to vector<16x8xbf16>
    %20 = vector.shape_cast %19 : vector<16x8xbf16> to vector<1x16x8xbf16>
    "tpu.trace_start"() <{level = 10 : i32, message = "bqd,bkd->bqk"}> : () -> ()
    %cst_16 = arith.constant dense<0.000000e+00> : vector<1x8x16xf32>
    %21 = tpu.matmul %16, %18, %cst_16 {dimension_numbers = #tpu.dot_dimension_numbers<[2], [2], [1], [1], [0, 0, 0, 1, 1, 1], [0], [0]>} : vector<1x8x8xbf16>, vector<1x16x8xbf16>, vector<1x8x16xf32> -> vector<1x8x16xf32>
    "tpu.trace_stop"() : () -> ()
    %c0_17 = arith.constant 0 : index
    %c0_18 = arith.constant 0 : index
    %c0_19 = arith.constant 0 : index
    %c0_20 = arith.constant 0 : index
    %22 = vector.load %arg4[%c0_17, %c0_18, %c0_19, %c0_20] : memref<1x1x8x16xi8, #tpu.memory_space<vmem>>, vector<1x1x8x16xi8>
    %23 = vector.shape_cast %22 : vector<1x1x8x16xi8> to vector<1x8x16xi8>
    %c0_i8 = arith.constant 0 : i8
    %24 = vector.broadcast %c0_i8 : i8 to vector<1x8x16xi8>
    %25 = arith.cmpi ne, %23, %24 : vector<1x8x16xi8>
    %cst_21 = arith.constant -1.000000e+30 : f32
    %26 = vector.broadcast %cst_21 : f32 to vector<1x8x16xf32>
    %27 = arith.select %25, %26, %21 : vector<1x8x16xi1>, vector<1x8x16xf32>
    %cst_22 = arith.constant dense<0xFF800000> : vector<1x8xf32>
    %28 = vector.multi_reduction <maximumf>, %27, %cst_22 [2] : vector<1x8x16xf32> to vector<1x8xf32>
    %29 = vector.shape_cast %28 : vector<1x8xf32> to vector<1x8x1xf32>
    %30 = vector.broadcast %29 : vector<1x8x1xf32> to vector<1x8x16xf32>
    %31 = arith.subf %27, %30 : vector<1x8x16xf32>
    %32 = math.exp %31 : vector<1x8x16xf32>
    %cst_23 = arith.constant 0.000000e+00 : f32
    %33 = vector.broadcast %cst_23 : f32 to vector<1x8x16xf32>
    %34 = arith.select %25, %33, %32 : vector<1x8x16xi1>, vector<1x8x16xf32>
    %cst_24 = arith.constant dense<0.000000e+00> : vector<1x8xf32>
    %35 = vector.multi_reduction <add>, %34, %cst_24 [2] : vector<1x8x16xf32> to vector<1x8xf32>
    %36 = vector.shape_cast %35 : vector<1x8xf32> to vector<1x8x1xf32>
    %cst_25 = arith.constant 0.000000e+00 : f32
    %37 = vector.broadcast %cst_25 : f32 to vector<1x8x1xf32>
    %38 = arith.cmpf oeq, %36, %37 : vector<1x8x1xf32>
    %cst_26 = arith.constant 1.000000e+00 : f32
    %39 = vector.broadcast %cst_26 : f32 to vector<1x8x1xf32>
    %40 = arith.select %38, %39, %36 : vector<1x8x1xi1>, vector<1x8x1xf32>
    %41 = tpu.reciprocal %40 {approx = true} : vector<1x8x1xf32> -> vector<1x8x1xf32>
    %42 = vector.broadcast %41 : vector<1x8x1xf32> to vector<1x8x16xf32>
    %43 = arith.mulf %34, %42 : vector<1x8x16xf32>
    %c0_27 = arith.constant 0 : index
    %c0_28 = arith.constant 0 : index
    %c0_29 = arith.constant 0 : index
    %44 = vector.load %arg11[%c0_27, %c0_28, %c0_29] : memref<1x8x16xf32, #tpu.memory_space<vmem>>, vector<1x8x16xf32>
    %45 = arith.addf %44, %43 : vector<1x8x16xf32>
    %c0_30 = arith.constant 0 : index
    %c0_31 = arith.constant 0 : index
    %c0_32 = arith.constant 0 : index
    %46 = vector.load %arg11[%c0_30, %c0_31, %c0_32] : memref<1x8x16xf32, #tpu.memory_space<vmem>>, vector<1x8x16xf32>
    tpu.vector_store %arg11[%c0_30, %c0_31, %c0_32], %45 {strides = array<i32>} : memref<1x8x16xf32, #tpu.memory_space<vmem>>, vector<1x8x16xf32>,
    %47 = arith.truncf %43 : vector<1x8x16xf32> to vector<1x8x16xbf16>
    "tpu.trace_start"() <{level = 10 : i32, message = "bqk,bkd->bqd"}> : () -> ()
    %cst_33 = arith.constant dense<0.000000e+00> : vector<1x8x8xf32>
    %48 = tpu.matmul %47, %20, %cst_33 {dimension_numbers = #tpu.dot_dimension_numbers<[2], [1], [1], [2], [0, 0, 0, 1, 1, 2], [0], [0]>} : vector<1x8x16xbf16>, vector<1x16x8xbf16>, vector<1x8x8xf32> -> vector<1x8x8xf32>
    "tpu.trace_stop"() : () -> ()
    %49 = vector.shape_cast %48 : vector<1x8x8xf32> to vector<8x8xf32>
    %c0_34 = arith.constant 0 : index
    %c0_35 = arith.constant 0 : index
    %50 = vector.load %arg13[%c0_34, %c0_35] : memref<8x1xf32, #tpu.memory_space<vmem>>, vector<8x1xf32>
    %51 = arith.mulf %49, %49 : vector<8x8xf32>
    %cst_36 = arith.constant dense<0.000000e+00> : vector<8xf32>
    %52 = vector.multi_reduction <add>, %51, %cst_36 [1] : vector<8x8xf32> to vector<8xf32>
    %53 = vector.shape_cast %52 : vector<8xf32> to vector<8x1xf32>
    %54 = arith.addf %50, %53 : vector<8x1xf32>
    %c0_37 = arith.constant 0 : index
    %c0_38 = arith.constant 0 : index
    %55 = vector.load %arg13[%c0_37, %c0_38] : memref<8x1xf32, #tpu.memory_space<vmem>>, vector<8x1xf32>
    tpu.vector_store %arg13[%c0_37, %c0_38], %54 {strides = array<i32>} : memref<8x1xf32, #tpu.memory_space<vmem>>, vector<8x1xf32>,
    %c0_39 = arith.constant 0 : index
    %c0_40 = arith.constant 0 : index
    %c0_41 = arith.constant 0 : index
    %56 = vector.load %arg10[%c0_39, %c0_40, %c0_41] : memref<1x8x32xf32, #tpu.memory_space<vmem>>, vector<1x8x32xf32>
    %57 = arith.truncf %49 : vector<8x8xf32> to vector<8x8xbf16>
    %c0_42 = arith.constant 0 : index
    %c0_43 = arith.constant 0 : index
    %c0_44 = arith.constant 0 : index
    %58 = vector.load %arg8[%c0_42, %c0_43, %c0_44] : memref<1x8x32xbf16, #tpu.memory_space<vmem>>, vector<1x8x32xbf16>
    %59 = vector.shape_cast %58 : vector<1x8x32xbf16> to vector<8x32xbf16>
    %cst_45 = arith.constant dense<0.000000e+00> : vector<8x32xf32>
    %60 = tpu.matmul %57, %59, %cst_45 {dimension_numbers = #tpu.dot_dimension_numbers<[1], [0], [0], [1], [0, 0, 1, 1], [], []>} : vector<8x8xbf16>, vector<8x32xbf16>, vector<8x32xf32> -> vector<8x32xf32>
    %61 = vector.shape_cast %60 : vector<8x32xf32> to vector<1x8x32xf32>
    %62 = arith.addf %56, %61 : vector<1x8x32xf32>
    %c0_46 = arith.constant 0 : index
    %c0_47 = arith.constant 0 : index
    %c0_48 = arith.constant 0 : index
    %63 = vector.load %arg10[%c0_46, %c0_47, %c0_48] : memref<1x8x32xf32, #tpu.memory_space<vmem>>, vector<1x8x32xf32>
    tpu.vector_store %arg10[%c0_46, %c0_47, %c0_48], %62 {strides = array<i32>} : memref<1x8x32xf32, #tpu.memory_space<vmem>>, vector<1x8x32xf32>,
    %c3_i32 = arith.constant 3 : i32
    %64 = arith.cmpi eq, %arg1, %c3_i32 : i32
    %65 = arith.extui %64 : i1 to i32
    %c0_i32_49 = arith.constant 0 : i32
    %66 = arith.cmpi ne, %65, %c0_i32_49 : i32
    scf.if %66 {
      %c0_50 = arith.constant 0 : index
      %c0_51 = arith.constant 0 : index
      %67 = vector.load %arg13[%c0_50, %c0_51] : memref<8x1xf32, #tpu.memory_space<vmem>>, vector<8x1xf32>
      %cst_52 = arith.constant 3.125000e-02 : f32
      %68 = vector.broadcast %cst_52 : f32 to vector<8x1xf32>
      %69 = arith.mulf %67, %68 : vector<8x1xf32>
      %cst_53 = arith.constant 1.1920929E-7 : f32
      %70 = vector.broadcast %cst_53 : f32 to vector<8x1xf32>
      %71 = arith.addf %69, %70 : vector<8x1xf32>
      %72 = math.rsqrt %71 : vector<8x1xf32>
      %c0_54 = arith.constant 0 : index
      %c0_55 = arith.constant 0 : index
      %c0_56 = arith.constant 0 : index
      %73 = vector.load %arg10[%c0_54, %c0_55, %c0_56] : memref<1x8x32xf32, #tpu.memory_space<vmem>>, vector<1x8x32xf32>
      %74 = vector.shape_cast %72 : vector<8x1xf32> to vector<1x8x1xf32>
      %75 = vector.broadcast %74 : vector<1x8x1xf32> to vector<1x8x32xf32>
      %76 = arith.mulf %73, %75 : vector<1x8x32xf32>
      %c0_57 = arith.constant 0 : index
      %c0_58 = arith.constant 0 : index
      %c0_59 = arith.constant 0 : index
      %77 = vector.load %arg10[%c0_57, %c0_58, %c0_59] : memref<1x8x32xf32, #tpu.memory_space<vmem>>, vector<1x8x32xf32>
      tpu.vector_store %arg10[%c0_57, %c0_58, %c0_59], %76 {strides = array<i32>} : memref<1x8x32xf32, #tpu.memory_space<vmem>>, vector<1x8x32xf32>,
      %c0_60 = arith.constant 0 : index
      %c0_61 = arith.constant 0 : index
      %c0_62 = arith.constant 0 : index
      %78 = vector.load %arg11[%c0_60, %c0_61, %c0_62] : memref<1x8x16xf32, #tpu.memory_space<vmem>>, vector<1x8x16xf32>
      %cst_63 = arith.constant 2.500000e-01 : f32
      %79 = vector.broadcast %cst_63 : f32 to vector<1x8x16xf32>
      %80 = arith.mulf %78, %79 : vector<1x8x16xf32>
      %c0_64 = arith.constant 0 : index
      %c0_65 = arith.constant 0 : index
      %c0_66 = arith.constant 0 : index
      %81 = vector.load %arg11[%c0_64, %c0_65, %c0_66] : memref<1x8x16xf32, #tpu.memory_space<vmem>>, vector<1x8x16xf32>
      tpu.vector_store %arg11[%c0_64, %c0_65, %c0_66], %80 {strides = array<i32>} : memref<1x8x16xf32, #tpu.memory_space<vmem>>, vector<1x8x16xf32>,
    } else {
    }
    return
  }
  func.func @transform_0(%arg0: i32, %arg1: i32) -> (i32, i32, i32) {
    %c0_i32 = arith.constant 0 : i32
    %c0_i32_0 = arith.constant 0 : i32
    %c0_i32_1 = arith.constant 0 : i32
    return %arg0, %c0_i32, %c0_i32_0 : i32, i32, i32
  }
  func.func @transform_1(%arg0: i32, %arg1: i32) -> (i32, i32, i32) {
    %c0_i32 = arith.constant 0 : i32
    %c0_i32_0 = arith.constant 0 : i32
    %c0_i32_1 = arith.constant 0 : i32
    return %arg0, %c0_i32, %c0_i32_0 : i32, i32, i32
  }
  func.func @transform_2(%arg0: i32, %arg1: i32) -> (i32, i32, i32, i32) {
    %c0_i32 = arith.constant 0 : i32
    %c0_i32_0 = arith.constant 0 : i32
    %c0_i32_1 = arith.constant 0 : i32
    return %arg1, %arg0, %c0_i32, %c0_i32_0 : i32, i32, i32, i32
  }
  func.func @transform_3(%arg0: i32, %arg1: i32) -> (i32, i32, i32) {
    %c0_i32 = arith.constant 0 : i32
    %c0_i32_0 = arith.constant 0 : i32
    %c0_i32_1 = arith.constant 0 : i32
    return %arg1, %c0_i32, %c0_i32_0 : i32, i32, i32
  }
  func.func @transform_4(%arg0: i32, %arg1: i32) -> (i32, i32, i32) {
    %c0_i32 = arith.constant 0 : i32
    %c0_i32_0 = arith.constant 0 : i32
    %c0_i32_1 = arith.constant 0 : i32
    return %arg1, %c0_i32, %c0_i32_0 : i32, i32, i32
  }
  func.func @transform_5(%arg0: i32, %arg1: i32) -> (i32, i32, i32) {
    %c0_i32 = arith.constant 0 : i32
    %c0_i32_0 = arith.constant 0 : i32
    %c0_i32_1 = arith.constant 0 : i32
    return %arg1, %c0_i32, %c0_i32_0 : i32, i32, i32
  }
  func.func @transform_6(%arg0: i32, %arg1: i32) -> (i32, i32, i32) {
    %c0_i32 = arith.constant 0 : i32
    %c0_i32_0 = arith.constant 0 : i32
    %c0_i32_1 = arith.constant 0 : i32
    return %arg1, %c0_i32, %c0_i32_0 : i32, i32, i32
  }
  func.func @transform_7(%arg0: i32, %arg1: i32) -> (i32, i32) {
    %c0_i32 = arith.constant 0 : i32
    %c0_i32_0 = arith.constant 0 : i32
    %c0_i32_1 = arith.constant 0 : i32
    return %c0_i32, %c0_i32_0 : i32, i32
  }
  func.func @transform_8(%arg0: i32, %arg1: i32) -> (i32, i32, i32) {
    %c0_i32 = arith.constant 0 : i32
    %c0_i32_0 = arith.constant 0 : i32
    %c0_i32_1 = arith.constant 0 : i32
    return %arg0, %c0_i32, %c0_i32_0 : i32, i32, i32
  }
  func.func @transform_9(%arg0: i32, %arg1: i32) -> (i32, i32, i32) {
    %c0_i32 = arith.constant 0 : i32
    %c0_i32_0 = arith.constant 0 : i32
    %c0_i32_1 = arith.constant 0 : i32
    return %arg0, %c0_i32, %c0_i32_0 : i32, i32, i32
  }
}

</mosaic_0001>

<llo_original>
// kernel: tpu_custom_call.1
$region0: #{tpu_custom_call.1}
  #allocation0 [shape = 'u32[]', space=smem, size = 0x4, offset = 0x4, fixed_abs, tag = 'smem constant byte address 0x4 - core index']
  #allocation1 [shape = 'u32[72,128]{1,0:T(1,128)}', space=vmem, size = 0x9000, scoped, tag = 'internal scratch']
  #allocation2 [shape = 'bf16[16,32]{1,0:T(8,128)(2,1)}', space=vmem, size = 0x1000, scoped, tag = 'scratch operand']
  #allocation3 [shape = 'f32[8,1]{1,0:T(8,128)}', space=vmem, size = 0x1000, scoped, tag = 'scratch operand']
  %s0 = inlined_call_operand.vmem [shape: f32[4,16,32], index: 0, kind: input, shape index: {}]
  %s1 = inlined_call_operand.vmem [shape: bf16[4,8,32], index: 1, kind: input, shape index: {}]
  %s2 = inlined_call_operand.vmem [shape: s8[4,4,8,16], index: 2, kind: input, shape index: {}]
  %s3 = inlined_call_operand.vmem [shape: bf16[4,32,8], index: 3, kind: input, shape index: {}]
  %s4 = inlined_call_operand.vmem [shape: bf16[4,32,8], index: 4, kind: input, shape index: {}]
  %s5 = inlined_call_operand.vmem [shape: bf16[4,32,8], index: 5, kind: input, shape index: {}]
  %s6 = inlined_call_operand.vmem [shape: bf16[4,8,32], index: 6, kind: input, shape index: {}]
  %s7 = inlined_call_operand.vmem [shape: f32[1,32], index: 7, kind: input, shape index: {}]
  %s8 = inlined_call_operand.hbm [shape: f32[4,8,32], index: 8, kind: output, shape index: {0}]
  %s9 = inlined_call_operand.hbm [shape: f32[4,8,16], index: 9, kind: output, shape index: {1}]
  %10 = xla_tuple %s8, %s9
  %s11 = sld [smem:[#allocation0]]
  $region81: #{tpu_custom_call.1} parent=0
    _
  %s13 = ssub.s32 1, %s11
  %s14 = scalar_select 0, %s13, %s11
  $region1: #{tpu_custom_call.1} parent=0
    #allocation4 [shape = 'u8[8192]{0}', space=vmem, size = 0x2000, scoped, tag = 'output window, operand 0']
    #allocation5 [shape = 's32[2]{0}', space=sflag, size = 0x8, scoped, tag = 'scoped memory for tpu_custom_call.1']
    #allocation6 [shape = 'u8[8192]{0}', space=vmem, size = 0x2000, scoped, tag = 'output window, operand 1']
    #allocation7 [shape = 's32[2]{0}', space=sflag, size = 0x8, scoped, tag = 'scoped memory for tpu_custom_call.1']
    %15 = vsyncpa [#allocation5], 0
    %s16 = scalar_lea.sflag [#allocation5], 1
    %17 = vsyncpa %s16, 0
    %18 = vsyncpa [#allocation7], 0
    %s19 = scalar_lea.sflag [#allocation7], 1
    %20 = vsyncpa %s19, 0
    loop: start=0, step=1, limit=18
    $region2: #{tpu_custom_call.1} parent=1 // loop_pre_header
      _
    $region3: #{tpu_custom_call.1} parent=1 // loop_header
      %s22 = sphi 0, %s26
      %p23 = scmp.ge.s32.totalorder %s22, 18
      %s29 = sphi 0, %s41
      %s30 = sphi 0, %s37
      %s31 = sphi 0, %s29
      %s32 = sphi 0, %s30
      %s33 = sphi 0, %s31
      %s34 = sphi 0, %s32
      %s44 = sphi 0, %s46
      %s47 = sphi 0, %s44
      %s48 = sphi 0, %s47
      %s64 = sphi 0, %s48
      %s70 = sphi 0, %s72
      %s73 = sphi 0, %s70
      %s74 = sphi 0, %s73
      %s90 = sphi 0, %s74
      %s98 = sphi 0, %s100
      %s101 = sphi 0, %s98
      %s102 = sphi 0, %s101
      %s118 = sphi 0, %s102
      %s124 = sphi 0, %s126
      %s127 = sphi 0, %s124
      %s128 = sphi 0, %s127
      %s144 = sphi 0, %s128
      %s150 = sphi 0, %s152
      %s153 = sphi 0, %s150
      %s154 = sphi 0, %s153
      %s170 = sphi 0, %s154
      %s176 = sphi 0, %s178
      %s179 = sphi 0, %s176
      %s180 = sphi 0, %s179
      %s196 = sphi 0, %s180
      %s202 = sphi 0, %s204
      %s205 = sphi 0, %s202
      %s206 = sphi 0, %s205
      %s222 = sphi 0, %s206
      %s226 = sphi 0, %s226
      %s228 = sphi 0, %s226
      %s229 = sphi 0, %s228
      %s243 = sphi 0, %s229
      %s249 = sphi 0, %s251
      %s252 = sphi 0, %s249
      %s253 = sphi 0, %s252
      %s269 = sphi 0, %s253
      %s275 = sphi 0, %s277
      %s278 = sphi 0, %s275
      %s279 = sphi 0, %s278
      %s295 = sphi 0, %s279
    $region4: #{tpu_custom_call.1} parent=1 // loop_header_branch
      %25 = sbr.rel (%p23) target = $region8
    $region5: #{tpu_custom_call.1} parent=1 // loop_body
      %s27 = ssub.s32 %s22, 1
      %s28 = ssub.s32 %s22, 2
      %s35 = sadd.s32 1, %s30
      %p36 = scmp.ge.s32.totalorder %s35, 4
      %s37 = scalar_select %p36, 0, %s35
      %s38 = sadd.s32 1, %s29
      %s39 = scalar_select %p36, %s38, %s29
      %p40 = scmp.ge.s32.totalorder %s39, 4
      %s41 = scalar_select %p40, 0, %s39
      %s42 = ssub.s32 %s29, %s41
      %p43 = scmp.eq.s32.totalorder %s42, 0
      %s45 = sadd.s32 %s44, 1
      %s46 = scalar_select %p43, %s44, %s45
      %p49 = pneg %p43
      %p50 = scmp.eq.s32.totalorder %s22, 15
      %p51 = por %p49, %p50
      %p52 = scmp.ne.s32.totalorder %s44, %s47
      %p53 = scmp.eq.s32.totalorder %s22, 0
      %p54 = por %p52, %p53
      %p55 = scmp.ne.s32.totalorder %s44, %s47
      %p56 = scmp.eq.s32.totalorder %s27, 15
      %p57 = por %p55, %p56
      %p58 = scmp.ne.s32.totalorder %s47, %s48
      %p59 = scmp.eq.s32.totalorder %s27, 0
      %p60 = por %p58, %p59
      %p61 = scmp.ne.s32.totalorder %s47, %s48
      %p62 = scmp.eq.s32.totalorder %s28, 15
      %p63 = por %p61, %p62
      %p65 = scmp.ne.s32.totalorder %s48, %s64
      %p66 = scmp.eq.s32.totalorder %s28, 0
      %p67 = por %p65, %p66
      %s68 = ssub.s32 %s29, %s41
      %p69 = scmp.eq.s32.totalorder %s68, 0
      %s71 = sadd.s32 %s70, 1
      %s72 = scalar_select %p69, %s70, %s71
      %p75 = pneg %p69
      %p76 = scmp.eq.s32.totalorder %s22, 15
      %p77 = por %p75, %p76
      %p78 = scmp.ne.s32.totalorder %s70, %s73
      %p79 = scmp.eq.s32.totalorder %s22, 0
      %p80 = por %p78, %p79
      %p81 = scmp.ne.s32.totalorder %s70, %s73
      %p82 = scmp.eq.s32.totalorder %s27, 15
      %p83 = por %p81, %p82
      %p84 = scmp.ne.s32.totalorder %s73, %s74
      %p85 = scmp.eq.s32.totalorder %s27, 0
      %p86 = por %p84, %p85
      %p87 = scmp.ne.s32.totalorder %s73, %s74
      %p88 = scmp.eq.s32.totalorder %s28, 15
      %p89 = por %p87, %p88
      %p91 = scmp.ne.s32.totalorder %s74, %s90
      %p92 = scmp.eq.s32.totalorder %s28, 0
      %p93 = por %p91, %p92
      %s94 = ssub.s32 %s30, %s37
      %s95 = ssub.s32 %s29, %s41
      %s96 = sor.u32 %s94, %s95
      %p97 = scmp.eq.s32.totalorder %s96, 0
      %s99 = sadd.s32 %s98, 1
      %s100 = scalar_select %p97, %s98, %s99
      %p103 = pneg %p97
      %p104 = scmp.eq.s32.totalorder %s22, 15
      %p105 = por %p103, %p104
      %p106 = scmp.ne.s32.totalorder %s98, %s101
      %p107 = scmp.eq.s32.totalorder %s22, 0
      %p108 = por %p106, %p107
      %p109 = scmp.ne.s32.totalorder %s98, %s101
      %p110 = scmp.eq.s32.totalorder %s27, 15
      %p111 = por %p109, %p110
      %p112 = scmp.ne.s32.totalorder %s101, %s102
      %p113 = scmp.eq.s32.totalorder %s27, 0
      %p114 = por %p112, %p113
      %p115 = scmp.ne.s32.totalorder %s101, %s102
      %p116 = scmp.eq.s32.totalorder %s28, 15
      %p117 = por %p115, %p116
      %p119 = scmp.ne.s32.totalorder %s102, %s118
      %p120 = scmp.eq.s32.totalorder %s28, 0
      %p121 = por %p119, %p120
      %s122 = ssub.s32 %s30, %s37
      %p123 = scmp.eq.s32.totalorder %s122, 0
      %s125 = sadd.s32 %s124, 1
      %s126 = scalar_select %p123, %s124, %s125
      %p129 = pneg %p123
      %p130 = scmp.eq.s32.totalorder %s22, 15
      %p131 = por %p129, %p130
      %p132 = scmp.ne.s32.totalorder %s124, %s127
      %p133 = scmp.eq.s32.totalorder %s22, 0
      %p134 = por %p132, %p133
      %p135 = scmp.ne.s32.totalorder %s124, %s127
      %p136 = scmp.eq.s32.totalorder %s27, 15
      %p137 = por %p135, %p136
      %p138 = scmp.ne.s32.totalorder %s127, %s128
      %p139 = scmp.eq.s32.totalorder %s27, 0
      %p140 = por %p138, %p139
      %p141 = scmp.ne.s32.totalorder %s127, %s128
      %p142 = scmp.eq.s32.totalorder %s28, 15
      %p143 = por %p141, %p142
      %p145 = scmp.ne.s32.totalorder %s128, %s144
      %p146 = scmp.eq.s32.totalorder %s28, 0
      %p147 = por %p145, %p146
      %s148 = ssub.s32 %s30, %s37
      %p149 = scmp.eq.s32.totalorder %s148, 0
      %s151 = sadd.s32 %s150, 1
      %s152 = scalar_select %p149, %s150, %s151
      %p155 = pneg %p149
      %p156 = scmp.eq.s32.totalorder %s22, 15
      %p157 = por %p155, %p156
      %p158 = scmp.ne.s32.totalorder %s150, %s153
      %p159 = scmp.eq.s32.totalorder %s22, 0
      %p160 = por %p158, %p159
      %p161 = scmp.ne.s32.totalorder %s150, %s153
      %p162 = scmp.eq.s32.totalorder %s27, 15
      %p163 = por %p161, %p162
      %p164 = scmp.ne.s32.totalorder %s153, %s154
      %p165 = scmp.eq.s32.totalorder %s27, 0
      %p166 = por %p164, %p165
      %p167 = scmp.ne.s32.totalorder %s153, %s154
      %p168 = scmp.eq.s32.totalorder %s28, 15
      %p169 = por %p167, %p168
      %p171 = scmp.ne.s32.totalorder %s154, %s170
      %p172 = scmp.eq.s32.totalorder %s28, 0
      %p173 = por %p171, %p172
      %s174 = ssub.s32 %s30, %s37
      %p175 = scmp.eq.s32.totalorder %s174, 0
      %s177 = sadd.s32 %s176, 1
      %s178 = scalar_select %p175, %s176, %s177
      %p181 = pneg %p175
      %p182 = scmp.eq.s32.totalorder %s22, 15
      %p183 = por %p181, %p182
      %p184 = scmp.ne.s32.totalorder %s176, %s179
      %p185 = scmp.eq.s32.totalorder %s22, 0
      %p186 = por %p184, %p185
      %p187 = scmp.ne.s32.totalorder %s176, %s179
      %p188 = scmp.eq.s32.totalorder %s27, 15
      %p189 = por %p187, %p188
      %p190 = scmp.ne.s32.totalorder %s179, %s180
      %p191 = scmp.eq.s32.totalorder %s27, 0
      %p192 = por %p190, %p191
      %p193 = scmp.ne.s32.totalorder %s179, %s180
      %p194 = scmp.eq.s32.totalorder %s28, 15
      %p195 = por %p193, %p194
      %p197 = scmp.ne.s32.totalorder %s180, %s196
      %p198 = scmp.eq.s32.totalorder %s28, 0
      %p199 = por %p197, %p198
      %s200 = ssub.s32 %s30, %s37
      %p201 = scmp.eq.s32.totalorder %s200, 0
      %s203 = sadd.s32 %s202, 1
      %s204 = scalar_select %p201, %s202, %s203
      %p207 = pneg %p201
      %p208 = scmp.eq.s32.totalorder %s22, 15
      %p209 = por %p207, %p208
      %p210 = scmp.ne.s32.totalorder %s202, %s205
      %p211 = scmp.eq.s32.totalorder %s22, 0
      %p212 = por %p210, %p211
      %p213 = scmp.ne.s32.totalorder %s202, %s205
      %p214 = scmp.eq.s32.totalorder %s27, 15
      %p215 = por %p213, %p214
      %p216 = scmp.ne.s32.totalorder %s205, %s206
      %p217 = scmp.eq.s32.totalorder %s27, 0
      %p218 = por %p216, %p217
      %p219 = scmp.ne.s32.totalorder %s205, %s206
      %p220 = scmp.eq.s32.totalorder %s28, 15
      %p221 = por %p219, %p220
      %p223 = scmp.ne.s32.totalorder %s206, %s222
      %p224 = scmp.eq.s32.totalorder %s28, 0
      %p225 = por %p223, %p224
      %s227 = sadd.s32 %s226, 1
      %p230 = scmp.eq.s32.totalorder %s22, 15
      %p231 = scmp.ne.s32.totalorder %s226, %s228
      %p232 = scmp.eq.s32.totalorder %s22, 0
      %p233 = por %p231, %p232
      %p234 = scmp.ne.s32.totalorder %s226, %s228
      %p235 = scmp.eq.s32.totalorder %s27, 15
      %p236 = por %p234, %p235
      %p237 = scmp.ne.s32.totalorder %s228, %s229
      %p238 = scmp.eq.s32.totalorder %s27, 0
      %p239 = por %p237, %p238
      %p240 = scmp.ne.s32.totalorder %s228, %s229
      %p241 = scmp.eq.s32.totalorder %s28, 15
      %p242 = por %p240, %p241
      %p244 = scmp.ne.s32.totalorder %s229, %s243
      %p245 = scmp.eq.s32.totalorder %s28, 0
      %p246 = por %p244, %p245
      %s247 = ssub.s32 %s29, %s41
      %p248 = scmp.eq.s32.totalorder %s247, 0
      %s250 = sadd.s32 %s249, 1
      %s251 = scalar_select %p248, %s249, %s250
      %p254 = pneg %p248
      %p255 = scmp.eq.s32.totalorder %s22, 15
      %p256 = por %p254, %p255
      %p257 = scmp.ne.s32.totalorder %s249, %s252
      %p258 = scmp.eq.s32.totalorder %s22, 0
      %p259 = por %p257, %p258
      %p260 = scmp.ne.s32.totalorder %s249, %s252
      %p261 = scmp.eq.s32.totalorder %s27, 15
      %p262 = por %p260, %p261
      %p263 = scmp.ne.s32.totalorder %s252, %s253
      %p264 = scmp.eq.s32.totalorder %s27, 0
      %p265 = por %p263, %p264
      %p266 = scmp.ne.s32.totalorder %s252, %s253
      %p267 = scmp.eq.s32.totalorder %s28, 15
      %p268 = por %p266, %p267
      %p270 = scmp.ne.s32.totalorder %s253, %s269
      %p271 = scmp.eq.s32.totalorder %s28, 0
      %p272 = por %p270, %p271
      %s273 = ssub.s32 %s29, %s41
      %p274 = scmp.eq.s32.totalorder %s273, 0
      %s276 = sadd.s32 %s275, 1
      %s277 = scalar_select %p274, %s275, %s276
      %p280 = pneg %p274
      %p281 = scmp.eq.s32.totalorder %s22, 15
      %p282 = por %p280, %p281
      %p283 = scmp.ne.s32.totalorder %s275, %s278
      %p284 = scmp.eq.s32.totalorder %s22, 0
      %p285 = por %p283, %p284
      %p286 = scmp.ne.s32.totalorder %s275, %s278
      %p287 = scmp.eq.s32.totalorder %s27, 15
      %p288 = por %p286, %p287
      %p289 = scmp.ne.s32.totalorder %s278, %s279
      %p290 = scmp.eq.s32.totalorder %s27, 0
      %p291 = por %p289, %p290
      %p292 = scmp.ne.s32.totalorder %s278, %s279
      %p293 = scmp.eq.s32.totalorder %s28, 15
      %p294 = por %p292, %p293
      %p296 = scmp.ne.s32.totalorder %s279, %s295
      %p297 = scmp.eq.s32.totalorder %s28, 0
      %p298 = por %p296, %p297
      %p299 = scmp.le.s32.totalorder 1, %s22
      %p300 = scmp.lt.s32.totalorder %s22, 17
      %p301 = pnand %p299, %p300
      %p302 = pneg %p301
      // Predicated region
      $region9: #{tpu_custom_call.1} parent=5 // pred_check
        _
      $region10: #{tpu_custom_call.1} parent=5 // pred_check_branch
        %304 = sbr.rel (%p301) target = $region12
      $region11: #{tpu_custom_call.1} parent=5 // pred_region
        %s305 = ssub.s32 %s22, 1
        // Predicated region
        $region13: #{tpu_custom_call.1} parent=11 // pred_check
          %p306 = pneg %p239
        $region14: #{tpu_custom_call.1} parent=11 // pred_check_branch
          %308 = sbr.rel (%p306) target = $region16
        $region15: #{tpu_custom_call.1} parent=11 // pred_region
          _
        $region16: #{tpu_custom_call.1} parent=11 // pred_fallthru
          _
      $region12: #{tpu_custom_call.1} parent=5 // pred_fallthru
        _
      %p309 = scmp.lt.s32.totalorder %s22, 16
      // Predicated region
      $region17: #{tpu_custom_call.1} parent=5 // pred_check
        %p310 = pneg %p309
      $region18: #{tpu_custom_call.1} parent=5 // pred_check_branch
        %312 = sbr.rel (%p310) target = $region20
      $region19: #{tpu_custom_call.1} parent=5 // pred_region
        // Predicated region
        $region21: #{tpu_custom_call.1} parent=19 // pred_check
          %p313 = pneg %p54
        $region22: #{tpu_custom_call.1} parent=19 // pred_check_branch
          %315 = sbr.rel (%p313) target = $region24
        $region23: #{tpu_custom_call.1} parent=19 // pred_region
          %p316 = scmp.lt.s32.totalorder %s29, 3
          %s317 = scalar_select %p316, %s29, 3
          %s318 = smul.addr %s317, 2
          %s319 = smul.addr %s318, 8
          %s320 = scalar_lea.vmem %s0, %s319
        $region24: #{tpu_custom_call.1} parent=19 // pred_fallthru
          _
        // Predicated region
        $region25: #{tpu_custom_call.1} parent=19 // pred_check
          %p321 = pneg %p80
        $region26: #{tpu_custom_call.1} parent=19 // pred_check_branch
          %323 = sbr.rel (%p321) target = $region28
        $region27: #{tpu_custom_call.1} parent=19 // pred_region
          %p324 = scmp.lt.s32.totalorder %s29, 3
          %s325 = scalar_select %p324, %s29, 3
          %s326 = smul.addr %s325, 4
          %s327 = scalar_lea.vmem %s1, %s326
        $region28: #{tpu_custom_call.1} parent=19 // pred_fallthru
          _
        // Predicated region
        $region29: #{tpu_custom_call.1} parent=19 // pred_check
          %p328 = pneg %p108
        $region30: #{tpu_custom_call.1} parent=19 // pred_check_branch
          %330 = sbr.rel (%p328) target = $region32
        $region31: #{tpu_custom_call.1} parent=19 // pred_region
          %p331 = scmp.lt.s32.totalorder %s30, 3
          %s332 = scalar_select %p331, %s30, 3
          %p333 = scmp.lt.s32.totalorder %s29, 3
          %s334 = scalar_select %p333, %s29, 3
          %s335 = smul.addr %s332, 4
          %s336 = sadd.s32 %s334, %s335
          %s337 = smul.addr %s336, 2
          %s338 = scalar_lea.vmem %s2, %s337
        $region32: #{tpu_custom_call.1} parent=19 // pred_fallthru
          _
        // Predicated region
        $region33: #{tpu_custom_call.1} parent=19 // pred_check
          %p339 = pneg %p134
        $region34: #{tpu_custom_call.1} parent=19 // pred_check_branch
          %341 = sbr.rel (%p339) target = $region36
        $region35: #{tpu_custom_call.1} parent=19 // pred_region
          %p342 = scmp.lt.s32.totalorder %s30, 3
          %s343 = scalar_select %p342, %s30, 3
          %s344 = smul.addr %s343, 4
          %s345 = smul.addr %s344, 4
          %s346 = scalar_lea.vmem %s3, %s345
        $region36: #{tpu_custom_call.1} parent=19 // pred_fallthru
          _
        // Predicated region
        $region37: #{tpu_custom_call.1} parent=19 // pred_check
          %p347 = pneg %p160
        $region38: #{tpu_custom_call.1} parent=19 // pred_check_branch
          %349 = sbr.rel (%p347) target = $region40
        $region39: #{tpu_custom_call.1} parent=19 // pred_region
          %p350 = scmp.lt.s32.totalorder %s30, 3
          %s351 = scalar_select %p350, %s30, 3
          %s352 = smul.addr %s351, 4
          %s353 = smul.addr %s352, 4
          %s354 = scalar_lea.vmem %s4, %s353
        $region40: #{tpu_custom_call.1} parent=19 // pred_fallthru
          _
        // Predicated region
        $region41: #{tpu_custom_call.1} parent=19 // pred_check
          %p355 = pneg %p186
        $region42: #{tpu_custom_call.1} parent=19 // pred_check_branch
          %357 = sbr.rel (%p355) target = $region44
        $region43: #{tpu_custom_call.1} parent=19 // pred_region
          %p358 = scmp.lt.s32.totalorder %s30, 3
          %s359 = scalar_select %p358, %s30, 3
          %s360 = smul.addr %s359, 4
          %s361 = smul.addr %s360, 4
          %s362 = scalar_lea.vmem %s5, %s361
        $region44: #{tpu_custom_call.1} parent=19 // pred_fallthru
          _
        // Predicated region
        $region45: #{tpu_custom_call.1} parent=19 // pred_check
          %p363 = pneg %p212
        $region46: #{tpu_custom_call.1} parent=19 // pred_check_branch
          %365 = sbr.rel (%p363) target = $region48
        $region47: #{tpu_custom_call.1} parent=19 // pred_region
          %p366 = scmp.lt.s32.totalorder %s30, 3
          %s367 = scalar_select %p366, %s30, 3
          %s368 = smul.addr %s367, 4
          %s369 = scalar_lea.vmem %s6, %s368
        $region48: #{tpu_custom_call.1} parent=19 // pred_fallthru
          _
      $region20: #{tpu_custom_call.1} parent=5 // pred_fallthru
        _
      %p370 = scmp.le.s32.totalorder 1, %s22
      %p371 = scmp.lt.s32.totalorder %s22, 17
      %p372 = pnand %p370, %p371
      %p373 = pneg %p372
      // Predicated region
      $region49: #{tpu_custom_call.1} parent=5 // pred_check
        _
      $region50: #{tpu_custom_call.1} parent=5 // pred_check_branch
        %375 = sbr.rel (%p372) target = $region52
      $region51: #{tpu_custom_call.1} parent=5 // pred_region
        %s376 = ssub.s32 %s22, 1
        %p377 = scmp.lt.s32.totalorder %s31, 3
        %s378 = scalar_select %p377, %s31, 3
        %s379 = smul.addr %s378, 2
        %s380 = smul.addr %s379, 8
        %s381 = scalar_lea.vmem %s0, %s380
        %p382 = pneg %p60
        %p383 = pneg %p57
        %p384 = scmp.lt.s32.totalorder %s31, 3
        %s385 = scalar_select %p384, %s31, 3
        %s386 = smul.addr %s385, 4
        %s387 = scalar_lea.vmem %s1, %s386
        %p388 = pneg %p86
        %p389 = pneg %p83
        %p390 = scmp.lt.s32.totalorder %s32, 3
        %s391 = scalar_select %p390, %s32, 3
        %p392 = scmp.lt.s32.totalorder %s31, 3
        %s393 = scalar_select %p392, %s31, 3
        %s394 = smul.addr %s391, 4
        %s395 = sadd.s32 %s393, %s394
        %s396 = smul.addr %s395, 2
        %s397 = scalar_lea.vmem %s2, %s396
        %p398 = pneg %p114
        %p399 = pneg %p111
        %p400 = scmp.lt.s32.totalorder %s32, 3
        %s401 = scalar_select %p400, %s32, 3
        %s402 = smul.addr %s401, 4
        %s403 = smul.addr %s402, 4
        %s404 = scalar_lea.vmem %s3, %s403
        %p405 = pneg %p140
        %p406 = pneg %p137
        %p407 = scmp.lt.s32.totalorder %s32, 3
        %s408 = scalar_select %p407, %s32, 3
        %s409 = smul.addr %s408, 4
        %s410 = smul.addr %s409, 4
        %s411 = scalar_lea.vmem %s4, %s410
        %p412 = pneg %p166
        %p413 = pneg %p163
        %p414 = scmp.lt.s32.totalorder %s32, 3
        %s415 = scalar_select %p414, %s32, 3
        %s416 = smul.addr %s415, 4
        %s417 = smul.addr %s416, 4
        %s418 = scalar_lea.vmem %s5, %s417
        %p419 = pneg %p192
        %p420 = pneg %p189
        %p421 = scmp.lt.s32.totalorder %s32, 3
        %s422 = scalar_select %p421, %s32, 3
        %s423 = smul.addr %s422, 4
        %s424 = scalar_lea.vmem %s6, %s423
        %p425 = pneg %p218
        %p426 = pneg %p215
        %p427 = pneg %p239
        %p428 = pneg %p236
        %p429 = pneg %p265
        %p430 = pneg %p262
        %s431 = sand.u32 %s252, 1
        %s432 = scalar_lea.sflag [#allocation5], %s431
        %s433 = sand.u32 %s252, 1
        %s434 = smul.addr %s433, 8
        %s435 = scalar_lea.vmem [#allocation4], %s434
        %p436 = pneg %p291
        %p437 = pneg %p288
        %s438 = sand.u32 %s278, 1
        %s439 = scalar_lea.sflag [#allocation7], %s438
        %s440 = sand.u32 %s278, 1
        %s441 = smul.addr %s440, 8
        %s442 = scalar_lea.vmem [#allocation6], %s441
        %p443 = scmp.lt.s32.totalorder %s31, 3
        %s444 = scalar_select %p443, %s31, 3
        %s445 = smul.addr %s444, 2
        %s446 = smul.addr %s445, 8
        %s447 = scalar_lea.vmem %s0, %s446
        %p448 = scmp.lt.s32.totalorder %s31, 3
        %s449 = scalar_select %p448, %s31, 3
        %s450 = smul.addr %s449, 4
        %s451 = scalar_lea.vmem %s1, %s450
        %p452 = scmp.lt.s32.totalorder %s32, 3
        %s453 = scalar_select %p452, %s32, 3
        %p454 = scmp.lt.s32.totalorder %s31, 3
        %s455 = scalar_select %p454, %s31, 3
        %s456 = smul.addr %s453, 4
        %s457 = sadd.s32 %s455, %s456
        %s458 = smul.addr %s457, 2
        %s459 = scalar_lea.vmem %s2, %s458
        %p460 = scmp.lt.s32.totalorder %s32, 3
        %s461 = scalar_select %p460, %s32, 3
        %s462 = smul.addr %s461, 4
        %s463 = smul.addr %s462, 4
        %s464 = scalar_lea.vmem %s3, %s463
        %p465 = scmp.lt.s32.totalorder %s32, 3
        %s466 = scalar_select %p465, %s32, 3
        %s467 = smul.addr %s466, 4
        %s468 = smul.addr %s467, 4
        %s469 = scalar_lea.vmem %s4, %s468
        %p470 = scmp.lt.s32.totalorder %s32, 3
        %s471 = scalar_select %p470, %s32, 3
        %s472 = smul.addr %s471, 4
        %s473 = smul.addr %s472, 4
        %s474 = scalar_lea.vmem %s5, %s473
        %p475 = scmp.lt.s32.totalorder %s32, 3
        %s476 = scalar_select %p475, %s32, 3
        %s477 = smul.addr %s476, 4
        %s478 = scalar_lea.vmem %s6, %s477
        %p482 = scmp.eq.s32.totalorder %s32, 0
        // Predicated region
        $region53: #{tpu_custom_call.1} parent=51 // pred_check
          %p483 = pneg %p482
        $region54: #{tpu_custom_call.1} parent=51 // pred_check_branch
          %485 = sbr.rel (%p483) target = $region56
        $region55: #{tpu_custom_call.1} parent=51 // pred_region
          %v486 = vld [vmem:[%s447] sm:$0xff]
          %v487 = vld [vmem:[%s447 + $0x8] sm:$0xff]
          %v488 = vmul.f32 %v486, %v486
          %v489 = vmul.f32 %v487, %v487
          %vm490 = vcmask 261120
          %v491 = vsel %vm490, %v488, 0.0
          %492 = vadd.xlane.f32.xlu0 %v491
          %v493 = vpop.xlane.xlu0 %492
          %v494 = vsel %vm490, %v489, 0.0
          %495 = vadd.xlane.f32.xlu0 %v494
          %v496 = vpop.xlane.xlu0 %495
          %v497 = vrcp.pop 32.0
          %v498 = vmul.f32 32.0, %v497
          %v499 = vsub.f32 1.0, %v498
          %v500 = vmul.f32 %v497, %v499
          %v501 = vadd.f32 %v497, %v500
          %vm502 = vweird.f32 %v497
          %v503 = vsel %vm502, %v497, %v501
          %v504 = vmul.f32 %v493, %v503
          %v505 = vmul.f32 %v496, %v503
          %v506 = vadd.f32 %v504, 1.1920929e-07
          %v507 = vadd.f32 %v505, 1.1920929e-07
          %v508 = vrsqrt.pop %v506
          %v509 = vmul.f32 %v508, %v506
          %v510 = vmul.f32 %v509, %v508
          %v511 = vmul.f32 0.5, %v510
          %v512 = vsub.f32 1.5, %v511
          %v513 = vmul.f32 %v508, %v512
          %vm514 = vweird.f32 %v506
          %vm515 = vweird.f32 %v508
          %vm516 = vmor %vm514, %vm515
          %v517 = vsel %vm516, %v508, %v513
          %v518 = vrsqrt.pop %v507
          %v519 = vmul.f32 %v518, %v507
          %v520 = vmul.f32 %v519, %v518
          %v521 = vmul.f32 0.5, %v520
          %v522 = vsub.f32 1.5, %v521
          %v523 = vmul.f32 %v518, %v522
          %vm524 = vweird.f32 %v507
          %vm525 = vweird.f32 %v518
          %vm526 = vmor %vm524, %vm525
          %v527 = vsel %vm526, %v518, %v523
          %v528 = vmul.f32 %v486, %v517
          %v529 = vmul.f32 %v487, %v527
          %v530 = vld [vmem:[%s7] sm:$0x1]
          %v532 = vperm.slane %v530, 0
          %v534 = vmul.f32 %v528, %v532
          %v535 = vmul.f32 %v529, %v532
          %v536 = vpack.c.bf16 %v534, %v534
          %v537 = vpack.c.bf16 %v535, %v535
          %vm538 = vcmask 257024
          %539 = vst.msk [vmem:[#allocation2] sm:$0xf] %vm538, %v536
          %540 = vst.msk [vmem:[#allocation2 + $0x4] sm:$0xf] %vm538, %v537
          %vm541 = vcmask 7168
          %542 = vst.msk [vmem:[#allocation3] sm:$0xff] %vm541, 0.0
          %543 = vst.msk [vmem:[%s435] sm:$0xff] %vm490, 0.0
          %vm544 = vcmask 130048
          %545 = vst.msk [vmem:[%s442] sm:$0xff] %vm544, 0.0
        $region56: #{tpu_custom_call.1} parent=51 // pred_fallthru
          _
        %v546 = vld [vmem:[#allocation2] sm:$0xf]
        %v547 = vld [vmem:[#allocation2 + $0x4] sm:$0xf]
        %v548 = vld [vmem:[%s451] sm:$0xf]
        %v549 = vld [vmem:[%s464] sm:$0xf]
        %v550 = vld [vmem:[%s464 + $0x4] sm:$0xf]
        %v551 = vld [vmem:[%s464 + $0x8] sm:$0xf]
        %v552 = vld [vmem:[%s464 + $0xc] sm:$0xf]
        %v557 = vunpack.c.l.b16 %v549
        %v558 = vunpack.c.l.b16 %v550
        %v559 = vunpack.c.l.b16 %v551
        %v560 = vunpack.c.l.b16 %v552
        %v561 = vpack.c.b16 %v558, %v557
        %v562 = vpack.c.b16 %v560, %v559
        %vm565 = vcmask 261120
        %v567 = vsel %vm565, %v548, 0
        %569 = vmatpush.bf16.msra.mxu0 0
        %570 = vmatpush.bf16.msra.mxu0 0
        %571 = vmatpush.bf16.msra.mxu0 0
        %572 = vmatpush.bf16.msra.mxu0 0
        %573 = vmatpush.bf16.msra.mxu0 0
        %574 = vmatpush.bf16.msra.mxu0 0
        %575 = vmatpush.bf16.msra.mxu0 %v562
        %576 = vmatpush.bf16.msra.mxu0 %v561
        %577 = vmatmul.bf16.gmra.mxu0 %v567
        %v578 = vpop.f32.mrf.mxu0
        %v579 = vadd.f32 0.0, %v578
        %v580 = vpop.f32.mrf.mxu0
        %581 = vdwg.mxu0
        %v582 = vld [vmem:[%s469] sm:$0xf]
        %v583 = vld [vmem:[%s469 + $0x4] sm:$0xf]
        %v584 = vld [vmem:[%s469 + $0x8] sm:$0xf]
        %v585 = vld [vmem:[%s469 + $0xc] sm:$0xf]
        %v588 = vunpack.c.l.b16 %v546
        %v589 = vunpack.c.l.b16 %v547
        %v590 = vpack.c.b16 %v589, %v588
        %v595 = vunpack.c.l.b16 %v582
        %v596 = vunpack.c.l.b16 %v583
        %v597 = vunpack.c.l.b16 %v584
        %v598 = vunpack.c.l.b16 %v585
        %v599 = vpack.c.b16 %v596, %v595
        %v600 = vpack.c.b16 %v598, %v597
        %v604 = vsel %vm565, %v590, 0
        %606 = vmatpush.bf16.msra.mxu0 0
        %607 = vmatpush.bf16.msra.mxu0 0
        %608 = vmatpush.bf16.msra.mxu0 0
        %609 = vmatpush.bf16.msra.mxu0 0
        %610 = vmatpush.bf16.msra.mxu0 0
        %611 = vmatpush.bf16.msra.mxu0 0
        %612 = vmatpush.bf16.msra.mxu0 %v600
        %613 = vmatpush.bf16.msra.mxu0 %v599
        %614 = vmatmul.bf16.gmra.mxu0 %v604
        %v615 = vpop.f32.mrf.mxu0
        %v616 = vadd.f32 0.0, %v615
        %v617 = vpop.f32.mrf.mxu0
        %v618 = vadd.f32 0.0, %v617
        %619 = vdwg.mxu0
        %v620 = vld [vmem:[%s474] sm:$0xf]
        %v621 = vld [vmem:[%s474 + $0x4] sm:$0xf]
        %v622 = vld [vmem:[%s474 + $0x8] sm:$0xf]
        %v623 = vld [vmem:[%s474 + $0xc] sm:$0xf]
        %v628 = vunpack.c.l.b16 %v620
        %v629 = vunpack.c.l.b16 %v621
        %v630 = vunpack.c.l.b16 %v622
        %v631 = vunpack.c.l.b16 %v623
        %v632 = vpack.c.b16 %v629, %v628
        %v633 = vpack.c.b16 %v631, %v630
        %636 = vmatpush.bf16.msra.mxu0 0
        %637 = vmatpush.bf16.msra.mxu0 0
        %638 = vmatpush.bf16.msra.mxu0 0
        %639 = vmatpush.bf16.msra.mxu0 0
        %640 = vmatpush.bf16.msra.mxu0 0
        %641 = vmatpush.bf16.msra.mxu0 0
        %642 = vmatpush.bf16.msra.mxu0 %v633
        %643 = vmatpush.bf16.msra.mxu0 %v632
        %644 = vmatmul.bf16.gmra.mxu0 %v604
        %v645 = vpop.f32.mrf.mxu0
        %v646 = vadd.f32 0.0, %v645
        %v647 = vpop.f32.mrf.mxu0
        %v648 = vadd.f32 0.0, %v647
        %649 = vdwg.mxu0
        %v650 = vpack.c.bf16 %v579, %v579
        %v651 = vpack.c.bf16 %v616, %v616
        %v652 = vpack.c.bf16 %v618, %v618
        %v653 = vpack.c.bf16 %v646, %v646
        %v654 = vpack.c.bf16 %v648, %v648
        %v657 = vunpack.c.l.b16 %v651
        %v658 = vunpack.c.l.b16 %v652
        %v659 = vpack.c.b16 %v658, %v657
        %vm660 = vcmask 64512
        %v662 = vsel %vm660, %v650, 0
        %v665 = vsel %vm660, %v659, 0
        %667 = vmatpush.bf16.xpose.msra.mxu0 0
        %668 = vmatpush.bf16.xpose.msra.mxu0 0
        %669 = vmatpush.bf16.xpose.msra.mxu0 0
        %670 = vmatpush.bf16.xpose.msra.mxu0 0
        %671 = vmatpush.bf16.xpose.msra.mxu0 0
        %672 = vmatpush.bf16.xpose.msra.mxu0 0
        %673 = vmatpush.bf16.xpose.msra.mxu0 0
        %674 = vmatpush.bf16.xpose.msra.mxu0 %v665
        %675 = vmatmul.bf16.gmra.mxu0 %v662
        %v676 = vpop.f32.mrf.mxu0
        %v677 = vadd.f32 0.0, %v676
        %v678 = vpop.f32.mrf.mxu0
        %679 = vdwg.mxu0
        %v680 = vld [vmem:[%s459] sm:$0x3]
        %vm681 = vnez %v680
        %v682 = vsel %vm681, 16843009, 0
        %v683 = vunpack.c.0.s8 %v682
        %vm684 = vcmp.ne.s32.totalorder %v683, 0
        %v685 = vsel %vm684, -1e+30, %v677
        %vm686 = vcmask 130048
        %v687 = vsel %vm686, %v685, -inf
        %688 = vmax.xlane.f32.xlu0 %v687
        %v689 = vpop.xlane.xlu0 %688
        %v690 = vsub.f32 %v685, %v689
        %v691 = vmul.f32 %v690, 1.442695
        %v692 = vpow.pop %v691
        %v693 = vsel %vm684, 0.0, %v692
        %v694 = vsel %vm686, %v693, 0.0
        %695 = vadd.xlane.f32.xlu0 %v694
        %v696 = vpop.xlane.xlu0 %695
        %vm697 = vcmp.eq.f32.partialorder %v696, 0.0
        %v698 = vsel %vm697, 1.0, %v696
        %v699 = vrcp.pop %v698
        %v700 = vmul.f32 %v693, %v699
        %v701 = vld [vmem:[%s442] sm:$0xff]
        %v702 = vadd.f32 %v701, %v700
        %703 = vst.msk [vmem:[%s442] sm:$0xff] %vm686, %v702
        %v704 = vpack.c.bf16 %v700, %v700
        %v707 = vunpack.c.l.b16 %v653
        %v708 = vunpack.c.l.b16 %v654
        %v709 = vpack.c.b16 %v708, %v707
        %v712 = vsel %vm686, %v704, 0
        %714 = vmatpush.bf16.msra.mxu0 0
        %715 = vmatpush.bf16.msra.mxu0 0
        %716 = vmatpush.bf16.msra.mxu0 0
        %717 = vmatpush.bf16.msra.mxu0 0
        %718 = vmatpush.bf16.msra.mxu0 0
        %719 = vmatpush.bf16.msra.mxu0 0
        %720 = vmatpush.bf16.msra.mxu0 0
        %721 = vmatpush.bf16.msra.mxu0 %v709
        %722 = vmatmul.bf16.gmra.mxu0 %v712
        %v723 = vpop.f32.mrf.mxu0
        %v724 = vadd.f32 0.0, %v723
        %v725 = vpop.f32.mrf.mxu0
        %726 = vdwg.mxu0
        %v727 = vld [vmem:[#allocation3] sm:$0xff]
        %v728 = vmul.f32 %v724, %v724
        %v729 = vsel %vm660, %v728, 0.0
        %730 = vadd.xlane.f32.xlu0 %v729
        %v731 = vpop.xlane.xlu0 %730
        %v732 = vadd.f32 %v727, %v731
        %vm733 = vcmask 7168
        %734 = vst.msk [vmem:[#allocation3] sm:$0xff] %vm733, %v732
        %v735 = vld [vmem:[%s435] sm:$0xff]
        %v736 = vpack.c.bf16 %v724, %v724
        %v737 = vld [vmem:[%s478] sm:$0xf]
        %v739 = vsel %vm660, %v736, 0
        %vm741 = vcmask 1043456
        %v743 = vsel %vm741, %v737, 0
        %745 = vmatpush.bf16.msra.mxu0 0
        %746 = vmatpush.bf16.msra.mxu0 0
        %747 = vmatpush.bf16.msra.mxu0 0
        %748 = vmatpush.bf16.msra.mxu0 0
        %749 = vmatpush.bf16.msra.mxu0 0
        %750 = vmatpush.bf16.msra.mxu0 0
        %751 = vmatpush.bf16.msra.mxu0 0
        %752 = vmatpush.bf16.msra.mxu0 %v743
        %753 = vmatmul.bf16.gmra.mxu0 %v739
        %v754 = vpop.f32.mrf.mxu0
        %v755 = vadd.f32 0.0, %v754
        %v756 = vpop.f32.mrf.mxu0
        %757 = vdwg.mxu0
        %v758 = vadd.f32 %v735, %v755
        %759 = vst.msk [vmem:[%s435] sm:$0xff] %vm565, %v758
        %p760 = scmp.eq.s32.totalorder %s32, 3
        // Predicated region
        $region57: #{tpu_custom_call.1} parent=51 // pred_check
          %p761 = pneg %p760
        $region58: #{tpu_custom_call.1} parent=51 // pred_check_branch
          %763 = sbr.rel (%p761) target = $region60
        $region59: #{tpu_custom_call.1} parent=51 // pred_region
          %v764 = vld [vmem:[#allocation3] sm:$0xff]
          %v765 = vmul.f32 %v764, 0.03125
          %v766 = vadd.f32 %v765, 1.1920929e-07
          %v767 = vrsqrt.pop %v766
          %v768 = vmul.f32 %v767, %v766
          %v769 = vmul.f32 %v768, %v767
          %v770 = vmul.f32 0.5, %v769
          %v771 = vsub.f32 1.5, %v770
          %v772 = vmul.f32 %v767, %v771
          %vm773 = vweird.f32 %v766
          %vm774 = vweird.f32 %v767
          %vm775 = vmor %vm773, %vm774
          %v776 = vsel %vm775, %v767, %v772
          %v777 = vld [vmem:[%s435] sm:$0xff]
          %779 = vset.pattern.permute.xlu0 0
          %780 = vperm.xlu0 %779, %v776
          %v781 = vpop.permute.xlu0 %780
          %v783 = vmul.f32 %v777, %v781
          %784 = vst.msk [vmem:[%s435] sm:$0xff] %vm565, %v783
          %v785 = vld [vmem:[%s442] sm:$0xff]
          %v786 = vmul.f32 %v785, 0.25
          %787 = vst.msk [vmem:[%s442] sm:$0xff] %vm686, %v786
        $region60: #{tpu_custom_call.1} parent=51 // pred_fallthru
          _
        %s788 = sand.u32 %s252, 1
        %s789 = scalar_lea.sflag [#allocation5], %s788
        %s790 = sand.u32 %s252, 1
        %s791 = smul.addr %s790, 8
        %s792 = scalar_lea.vmem [#allocation4], %s791
        %s793 = sand.u32 %s278, 1
        %s794 = scalar_lea.sflag [#allocation7], %s793
        %s795 = sand.u32 %s278, 1
        %s796 = smul.addr %s795, 8
        %s797 = scalar_lea.vmem [#allocation6], %s796
        // Predicated region
        $region61: #{tpu_custom_call.1} parent=51 // pred_check
          %p798 = pneg %p262
        $region62: #{tpu_custom_call.1} parent=51 // pred_check_branch
          %800 = sbr.rel (%p798) target = $region64
        $region63: #{tpu_custom_call.1} parent=51 // pred_region
          %802 = vsyncadd %s789, 0
          %s803 = smul.addr %s31, 8
          %s804 = scalar_lea.hbm %s8, %s803
          %s806 = sshll.u32 %s792, 4
          %s807 = int_to_ptr.vmem [resolvable:$true] %s806
          %s808 = sshll.u32 %s804, 4
          %s809 = int_to_ptr.hbm [resolvable:$true] %s808
          %811 = dma.vmem_to_hbm [thread:$0]  %s807, 128, %s809, %s789
        $region64: #{tpu_custom_call.1} parent=51 // pred_fallthru
          _
        // Predicated region
        $region65: #{tpu_custom_call.1} parent=51 // pred_check
          %p812 = pneg %p288
        $region66: #{tpu_custom_call.1} parent=51 // pred_check_branch
          %814 = sbr.rel (%p812) target = $region68
        $region67: #{tpu_custom_call.1} parent=51 // pred_region
          %816 = vsyncadd %s794, 0
          %s817 = smul.addr %s31, 8
          %s818 = scalar_lea.hbm %s9, %s817
          %s820 = sshll.u32 %s797, 4
          %s821 = int_to_ptr.vmem [resolvable:$true] %s820
          %s822 = sshll.u32 %s818, 4
          %s823 = int_to_ptr.hbm [resolvable:$true] %s822
          %825 = dma.vmem_to_hbm [thread:$0]  %s821, 128, %s823, %s794
        $region68: #{tpu_custom_call.1} parent=51 // pred_fallthru
          _
      $region52: #{tpu_custom_call.1} parent=5 // pred_fallthru
        _
      %p826 = scmp.le.s32.totalorder 2, %s22
      // Predicated region
      $region69: #{tpu_custom_call.1} parent=5 // pred_check
        %p827 = pneg %p826
      $region70: #{tpu_custom_call.1} parent=5 // pred_check_branch
        %829 = sbr.rel (%p827) target = $region72
      $region71: #{tpu_custom_call.1} parent=5 // pred_region
        %s830 = ssub.s32 %s22, 2
        // Predicated region
        $region73: #{tpu_custom_call.1} parent=71 // pred_check
          %p831 = pneg %p268
        $region74: #{tpu_custom_call.1} parent=71 // pred_check_branch
          %833 = sbr.rel (%p831) target = $region76
        $region75: #{tpu_custom_call.1} parent=71 // pred_region
          %s834 = sand.u32 %s253, 1
          %s835 = scalar_lea.sflag [#allocation5], %s834
          %s836 = sand.u32 %s253, 1
          %s837 = smul.addr %s836, 8
          %s838 = scalar_lea.vmem [#allocation4], %s837
          %840 = dma.done %s835, 128
        $region76: #{tpu_custom_call.1} parent=71 // pred_fallthru
          _
        // Predicated region
        $region77: #{tpu_custom_call.1} parent=71 // pred_check
          %p841 = pneg %p294
        $region78: #{tpu_custom_call.1} parent=71 // pred_check_branch
          %843 = sbr.rel (%p841) target = $region80
        $region79: #{tpu_custom_call.1} parent=71 // pred_region
          %s844 = sand.u32 %s279, 1
          %s845 = scalar_lea.sflag [#allocation7], %s844
          %s846 = sand.u32 %s279, 1
          %s847 = smul.addr %s846, 8
          %s848 = scalar_lea.vmem [#allocation6], %s847
          %850 = dma.done %s845, 128
        $region80: #{tpu_custom_call.1} parent=71 // pred_fallthru
          _
      $region72: #{tpu_custom_call.1} parent=5 // pred_fallthru
        _
    $region6: #{tpu_custom_call.1} parent=1 // loop_footer
      %s26 = sadd.s32 1, %s22
    $region7: #{tpu_custom_call.1} parent=1 // loop_footer_branch
      %21 = sbr.rel target = $region3
    $region8: #{tpu_custom_call.1} parent=1 // loop_exit
      _
    %851 = vsyncpa [#allocation5], 1
    %s852 = scalar_lea.sflag [#allocation5], 1
    %853 = vsyncpa %s852, 1
    %854 = vsyncpa [#allocation7], 1
    %s855 = scalar_lea.sflag [#allocation7], 1
    %856 = vsyncpa %s855, 1

</llo_original>
